<compile_context>
chip_gen: v7x
topology: tpu7x:2x2x1
jax: 0.10.0
libtpu: 0.0.40
codegen_flags: <defaults>
</compile_context>

<pallas_src>
import math

import jax
import jax.numpy as jnp
from jax.experimental import pallas as pl
from jax.experimental.pallas import tpu as pltpu


# --------------------------------------------------------------------------
# Kernels
# --------------------------------------------------------------------------
def _support_kernel(x_ref, w_ref, s_ref):
    # support tile = x_tile @ W_tile  (bf16 in, f32 MXU accumulation, bf16 out)
    s_ref[...] = jnp.dot(
        x_ref[...], w_ref[...], preferred_element_type=jnp.float32
    ).astype(s_ref.dtype)


def _aggregate_kernel(mask_ref, adj_ref, s_ref, b_ref, out_ref, acc_ref):
    # grid = (i: output-row blocks, j: out-feature blocks, k: reduction over N)
    i = pl.program_id(0)
    k = pl.program_id(2)
    nbk = pl.num_programs(2)

    @pl.when(k == 0)
    def _init():
        acc_ref[...] = jnp.zeros_like(acc_ref)

    # Skip MXU work for all-zero adjacency blocks (block-sparse adj).
    @pl.when(mask_ref[i * nbk + k] != 0)
    def _accum():
        acc_ref[...] += jnp.dot(
            adj_ref[...], s_ref[...], preferred_element_type=jnp.float32
        )

    @pl.when(k == nbk - 1)
    def _finalize():
        out_ref[...] = (acc_ref[...] + b_ref[...]).astype(out_ref.dtype)


# --------------------------------------------------------------------------
# Wrapper
# --------------------------------------------------------------------------
def _round_up(x, m):
    return ((x + m - 1) // m) * m


def _pick_tiles(n, out_f_pad):
    tm = min(256, _round_up(n, 8))        # output-row tile (sublane axis)
    tk = min(512, _round_up(n, 128))      # reduction tile over N (lane axis of adj)
    tn = 256 if out_f_pad % 256 == 0 else 128
    return tm, tk, tn


@jax.jit
def graph_convolution(x, adj, weight, bias=None):
    """Pallas GCN layer: adj @ (x @ weight) [+ bias]."""
    n, in_f = x.shape
    in_f_w, out_f = weight.shape
    assert in_f == in_f_w
    assert adj.shape == (n, n)
    out_dtype = x.dtype

    in_f_pad = _round_up(in_f, 128)
    out_f_pad = _round_up(out_f, 128)
    tm, tk, tn = _pick_tiles(n, out_f_pad)
    n_pad_m = _round_up(n, tm)            # output / adj-row padding
    n_pad_k = _round_up(n, tk)            # reduction (adj-col / support-row) padding

    # Zero padding does not change the math.
    x_p = jnp.zeros((n_pad_k, in_f_pad), x.dtype).at[:n, :in_f].set(x)
    w_p = jnp.zeros((in_f_pad, out_f_pad), weight.dtype).at[:in_f, :out_f].set(weight)
    adj_p = jnp.zeros((n_pad_m, n_pad_k), adj.dtype).at[:n, :n].set(adj)
    if bias is not None:
        b_p = jnp.zeros((1, out_f_pad), jnp.float32).at[0, :out_f].set(
            bias.astype(jnp.float32)
        )
    else:
        b_p = jnp.zeros((1, out_f_pad), jnp.float32)

    # bf16 MXU inputs (f32 accumulation kept inside the kernels).
    x_bf = x_p.astype(jnp.bfloat16)
    w_bf = w_p.astype(jnp.bfloat16)
    adj_bf = adj_p.astype(jnp.bfloat16)

    # ---- (1) support = x @ W, stored bf16 for the second matmul ----------
    gs1 = pltpu.PrefetchScalarGridSpec(
        num_scalar_prefetch=0,
        grid=(n_pad_k // tk, out_f_pad // tn),
        in_specs=[
            pl.BlockSpec((tk, in_f_pad), lambda m, j: (m, 0)),
            pl.BlockSpec((in_f_pad, tn), lambda m, j: (0, j)),
        ],
        out_specs=pl.BlockSpec((tk, tn), lambda m, j: (m, j)),
    )
    support = pl.pallas_call(
        _support_kernel,
        out_shape=jax.ShapeDtypeStruct((n_pad_k, out_f_pad), jnp.bfloat16),
        grid_spec=gs1,
        compiler_params=pltpu.CompilerParams(
            dimension_semantics=("parallel", "parallel")
        ),
        cost_estimate=pl.CostEstimate(
            flops=2 * n_pad_k * in_f_pad * out_f_pad,
            transcendentals=0,
            bytes_accessed=(x_bf.size + w_bf.size) * 2 + n_pad_k * out_f_pad * 2,
        ),
    )(x_bf, w_bf)

    # ---- (2) out = adj @ support + bias, block-sparse over adj -----------
    nbi, nbj, nbk = n_pad_m // tm, out_f_pad // tn, n_pad_k // tk
    adj_blocks = adj_p.reshape(nbi, tm, nbk, tk)
    block_mask = (adj_blocks != 0).any(axis=(1, 3)).astype(jnp.int32).reshape(-1)

    gs2 = pltpu.PrefetchScalarGridSpec(
        num_scalar_prefetch=1,
        grid=(nbi, nbj, nbk),
        in_specs=[
            pl.BlockSpec((tm, tk), lambda i, j, k, mask: (i, k)),   # adj
            pl.BlockSpec((tk, tn), lambda i, j, k, mask: (k, j)),   # support
            pl.BlockSpec((1, tn), lambda i, j, k, mask: (0, j)),    # bias
        ],
        out_specs=pl.BlockSpec((tm, tn), lambda i, j, k, mask: (i, j)),
        scratch_shapes=[pltpu.VMEM((tm, tn), jnp.float32)],
    )
    out_p = pl.pallas_call(
        _aggregate_kernel,
        out_shape=jax.ShapeDtypeStruct((n_pad_m, out_f_pad), out_dtype),
        grid_spec=gs2,
        compiler_params=pltpu.CompilerParams(
            dimension_semantics=("parallel", "parallel", "arbitrary")
        ),
        cost_estimate=pl.CostEstimate(
            flops=2 * n_pad_m * n_pad_k * out_f_pad,
            transcendentals=0,
            bytes_accessed=(
                adj_bf.size * 2
                + support.size * 2
                + n_pad_m * out_f_pad * 4
                + out_f_pad * 4
            ),
        ),
    )(block_mask, adj_bf, support, b_p)

    return out_p[:n, :out_f]


def init_params(key, in_features, out_features, bias=True):
    """Deterministic init matching PyTorch reset_parameters: U(-stdv, stdv)."""
    stdv = 1.0 / math.sqrt(out_features)
    kw, kb = jax.random.split(key)
    weight = jax.random.uniform(
        kw, (in_features, out_features), jnp.float32, minval=-stdv, maxval=stdv
    )
    b = (
        jax.random.uniform(kb, (out_features,), jnp.float32, minval=-stdv, maxval=stdv)
        if bias
        else None
    )
    return weight, b


if __name__ == "__main__":
    key = jax.random.PRNGKey(0)
    k_x, k_adj, k_p = jax.random.split(key, 3)

    N = 8            # number of graph nodes
    IN_F = 16        # in_features
    OUT_F = 32       # out_features

    x = jax.random.normal(k_x, (N, IN_F), jnp.float32)

    # Symmetric row-normalized dense adjacency (typical GCN input).
    a = (jax.random.uniform(k_adj, (N, N)) > 0.5).astype(jnp.float32)
    a = jnp.clip(a + a.T + jnp.eye(N, dtype=jnp.float32), 0.0, 1.0)
    adj = a / jnp.sum(a, axis=1, keepdims=True)

    weight, bias = init_params(k_p, IN_F, OUT_F, bias=True)

    out = graph_convolution(x, adj, weight, bias)
    out = jax.block_until_ready(out)

    # Reference in plain JAX (f32); tolerance accounts for bf16 MXU inputs.
    ref = adj @ (x @ weight) + bias
    assert out.shape == (N, OUT_F)
    assert jnp.allclose(out, ref, atol=2e-2, rtol=2e-2), float(
        jnp.max(jnp.abs(out - ref))
    )

    # No-bias path.
    out_nb = jax.block_until_ready(graph_convolution(x, adj, weight, None))
    ref_nb = adj @ (x @ weight)
    assert jnp.allclose(out_nb, ref_nb, atol=2e-2, rtol=2e-2)

    print("KERNEL_OK")
</pallas_src>

<mosaic_0001>
module attributes {stable_mosaic.version = 11 : i64} {
  func.func @_support_kernel(%arg0: i32, %arg1: i32, %arg2: memref<128x128xbf16, #tpu.memory_space<vmem>>, %arg3: memref<128x128xbf16, #tpu.memory_space<vmem>>, %arg4: memref<128x128xbf16, #tpu.memory_space<vmem>>) attributes {dimension_semantics = [#tpu.dimension_semantics<parallel>, #tpu.dimension_semantics<parallel>], iteration_bounds = array<i64: 1, 1>, scalar_prefetch = 0 : i64, scratch_operands = 0 : i64, tpu.core_type = #tpu.core_type<tc>, window_params = [{transform_indices = @transform_0, window_bounds = array<i64: 128, 128>}, {transform_indices = @transform_1, window_bounds = array<i64: 128, 128>}, {transform_indices = @transform_2, window_bounds = array<i64: 128, 128>}]} {
    %c0 = arith.constant 0 : index
    %c0_0 = arith.constant 0 : index
    %0 = vector.load %arg2[%c0, %c0_0] : memref<128x128xbf16, #tpu.memory_space<vmem>>, vector<128x128xbf16>
    %c0_1 = arith.constant 0 : index
    %c0_2 = arith.constant 0 : index
    %1 = vector.load %arg3[%c0_1, %c0_2] : memref<128x128xbf16, #tpu.memory_space<vmem>>, vector<128x128xbf16>
    %cst = arith.constant dense<0.000000e+00> : vector<128x128xf32>
    %2 = tpu.matmul %0, %1, %cst {dimension_numbers = #tpu.dot_dimension_numbers<[1], [0], [0], [1], [0, 0, 1, 1], [], []>} : vector<128x128xbf16>, vector<128x128xbf16>, vector<128x128xf32> -> vector<128x128xf32>
    %3 = arith.truncf %2 : vector<128x128xf32> to vector<128x128xbf16>
    %c0_3 = arith.constant 0 : index
    %c0_4 = arith.constant 0 : index
    %4 = vector.load %arg4[%c0_3, %c0_4] : memref<128x128xbf16, #tpu.memory_space<vmem>>, vector<128x128xbf16>
    tpu.vector_store %arg4[%c0_3, %c0_4], %3 {strides = array<i32>} : memref<128x128xbf16, #tpu.memory_space<vmem>>, vector<128x128xbf16>,
    return
  }
  func.func @transform_0(%arg0: i32, %arg1: i32) -> (i32, i32) {
    %c0_i32 = arith.constant 0 : i32
    %c0_i32_0 = arith.constant 0 : i32
    return %arg0, %c0_i32 : i32, i32
  }
  func.func @transform_1(%arg0: i32, %arg1: i32) -> (i32, i32) {
    %c0_i32 = arith.constant 0 : i32
    %c0_i32_0 = arith.constant 0 : i32
    return %c0_i32, %arg1 : i32, i32
  }
  func.func @transform_2(%arg0: i32, %arg1: i32) -> (i32, i32) {
    %c0_i32 = arith.constant 0 : i32
    return %arg0, %arg1 : i32, i32
  }
}

module attributes {stable_mosaic.version = 11 : i64} {
  func.func @_aggregate_kernel(%arg0: i32, %arg1: i32, %arg2: i32, %arg3: memref<1xi32, #tpu.memory_space<smem>>, %arg4: memref<8x128xbf16, #tpu.memory_space<vmem>>, %arg5: memref<128x128xbf16, #tpu.memory_space<vmem>>, %arg6: memref<1x128xf32, #tpu.memory_space<vmem>>, %arg7: memref<8x128xf32, #tpu.memory_space<vmem>>, %arg8: memref<8x128xf32, #tpu.memory_space<vmem>>) attributes {dimension_semantics = [#tpu.dimension_semantics<parallel>, #tpu.dimension_semantics<parallel>, #tpu.dimension_semantics<arbitrary>], iteration_bounds = array<i64: 1, 1, 1>, scalar_prefetch = 1 : i64, scratch_operands = 1 : i64, tpu.core_type = #tpu.core_type<tc>, window_params = [{transform_indices = @transform_0, window_bounds = array<i64: 8, 128>}, {transform_indices = @transform_1, window_bounds = array<i64: 128, 128>}, {transform_indices = @transform_2, window_bounds = array<i64: 1, 128>}, {transform_indices = @transform_3, window_bounds = array<i64: 8, 128>}]} {
    %c0_i32 = arith.constant 0 : i32
    %0 = arith.cmpi eq, %arg2, %c0_i32 : i32
    %1 = arith.extui %0 : i1 to i32
    %c0_i32_0 = arith.constant 0 : i32
    %2 = arith.cmpi ne, %1, %c0_i32_0 : i32
    scf.if %2 {
      %cst = arith.constant 0.000000e+00 : f32
      %13 = vector.broadcast %cst : f32 to vector<8x128xf32>
      %c0 = arith.constant 0 : index
      %c0_5 = arith.constant 0 : index
      %14 = vector.load %arg8[%c0, %c0_5] : memref<8x128xf32, #tpu.memory_space<vmem>>, vector<8x128xf32>
      tpu.vector_store %arg8[%c0, %c0_5], %13 {strides = array<i32>} : memref<8x128xf32, #tpu.memory_space<vmem>>, vector<8x128xf32>,
    } else {
    }
    %c1_i32 = arith.constant 1 : i32
    %3 = arith.muli %arg0, %c1_i32 : i32
    %4 = arith.addi %3, %arg2 : i32
    %5 = arith.index_cast %4 : i32 to index
    %6 = memref.load %arg3[%5] : memref<1xi32, #tpu.memory_space<smem>>
    %c0_i32_1 = arith.constant 0 : i32
    %7 = arith.cmpi ne, %6, %c0_i32_1 : i32
    %8 = arith.extui %7 : i1 to i32
    %c0_i32_2 = arith.constant 0 : i32
    %9 = arith.cmpi ne, %8, %c0_i32_2 : i32
    scf.if %9 {
      %c0 = arith.constant 0 : index
      %c0_5 = arith.constant 0 : index
      %13 = vector.load %arg8[%c0, %c0_5] : memref<8x128xf32, #tpu.memory_space<vmem>>, vector<8x128xf32>
      %c0_6 = arith.constant 0 : index
      %c0_7 = arith.constant 0 : index
      %14 = vector.load %arg4[%c0_6, %c0_7] : memref<8x128xbf16, #tpu.memory_space<vmem>>, vector<8x128xbf16>
      %c0_8 = arith.constant 0 : index
      %c0_9 = arith.constant 0 : index
      %15 = vector.load %arg5[%c0_8, %c0_9] : memref<128x128xbf16, #tpu.memory_space<vmem>>, vector<128x128xbf16>
      %cst = arith.constant dense<0.000000e+00> : vector<8x128xf32>
      %16 = tpu.matmul %14, %15, %cst {dimension_numbers = #tpu.dot_dimension_numbers<[1], [0], [0], [1], [0, 0, 1, 1], [], []>} : vector<8x128xbf16>, vector<128x128xbf16>, vector<8x128xf32> -> vector<8x128xf32>
      %17 = arith.addf %13, %16 : vector<8x128xf32>
      %c0_10 = arith.constant 0 : index
      %c0_11 = arith.constant 0 : index
      %18 = vector.load %arg8[%c0_10, %c0_11] : memref<8x128xf32, #tpu.memory_space<vmem>>, vector<8x128xf32>
      tpu.vector_store %arg8[%c0_10, %c0_11], %17 {strides = array<i32>} : memref<8x128xf32, #tpu.memory_space<vmem>>, vector<8x128xf32>,
    } else {
    }
    %c0_i32_3 = arith.constant 0 : i32
    %10 = arith.cmpi eq, %arg2, %c0_i32_3 : i32
    %11 = arith.extui %10 : i1 to i32
    %c0_i32_4 = arith.constant 0 : i32
    %12 = arith.cmpi ne, %11, %c0_i32_4 : i32
    scf.if %12 {
      %c0 = arith.constant 0 : index
      %c0_5 = arith.constant 0 : index
      %13 = vector.load %arg8[%c0, %c0_5] : memref<8x128xf32, #tpu.memory_space<vmem>>, vector<8x128xf32>
      %c0_6 = arith.constant 0 : index
      %c0_7 = arith.constant 0 : index
      %14 = vector.load %arg6[%c0_6, %c0_7] : memref<1x128xf32, #tpu.memory_space<vmem>>, vector<1x128xf32>
      %15 = vector.broadcast %14 : vector<1x128xf32> to vector<8x128xf32>
      %16 = arith.addf %13, %15 : vector<8x128xf32>
      %c0_8 = arith.constant 0 : index
      %c0_9 = arith.constant 0 : index
      %17 = vector.load %arg7[%c0_8, %c0_9] : memref<8x128xf32, #tpu.memory_space<vmem>>, vector<8x128xf32>
      tpu.vector_store %arg7[%c0_8, %c0_9], %16 {strides = array<i32>} : memref<8x128xf32, #tpu.memory_space<vmem>>, vector<8x128xf32>,
    } else {
    }
    return
  }
  func.func @transform_0(%arg0: i32, %arg1: i32, %arg2: i32, %arg3: memref<1xi32, #tpu.memory_space<smem>>) -> (i32, i32) {
    %c0_i32 = arith.constant 0 : i32
    return %arg0, %arg2 : i32, i32
  }
  func.func @transform_1(%arg0: i32, %arg1: i32, %arg2: i32, %arg3: memref<1xi32, #tpu.memory_space<smem>>) -> (i32, i32) {
    %c0_i32 = arith.constant 0 : i32
    return %arg2, %arg1 : i32, i32
  }
  func.func @transform_2(%arg0: i32, %arg1: i32, %arg2: i32, %arg3: memref<1xi32, #tpu.memory_space<smem>>) -> (i32, i32) {
    %c0_i32 = arith.constant 0 : i32
    %c0_i32_0 = arith.constant 0 : i32
    return %c0_i32, %arg1 : i32, i32
  }
  func.func @transform_3(%arg0: i32, %arg1: i32, %arg2: i32, %arg3: memref<1xi32, #tpu.memory_space<smem>>) -> (i32, i32) {
    %c0_i32 = arith.constant 0 : i32
    return %arg0, %arg1 : i32, i32
  }
}

</mosaic_0001>

<llo_original>
// kernel: graph_convolution.3
$region0: #{graph_convolution.3}
  #allocation0 [shape = 'u32[]', space=smem, size = 0x4, offset = 0x4, fixed_abs, tag = 'smem constant byte address 0x4 - core index']
  #allocation1 [shape = 'u32[144,128]{1,0:T(1,128)}', space=vmem, size = 0x12000, scoped, tag = 'internal scratch']
  #allocation2 [shape = 'f32[8,128]{1,0:T(8,128)}', space=vmem, size = 0x1000, scoped, tag = 'scratch operand']
  #allocation3 [shape = 's32[1]{0}', space=sflag, size = 0x4, scoped, tag = 'scoped memory for graph_convolution.3']
  #allocation4 [shape = 's32[1]{0:T(128)S(6)}', space=smem, size = 0x200, scoped, tag = 'prefetched SMEM operand 0']
  %s0 = inlined_call_operand.<no memory space> [shape: s32[1], index: 0, kind: input, shape index: {}]
  %s1 = inlined_call_operand.vmem [shape: bf16[8,128], index: 1, kind: input, shape index: {}]
  %s2 = inlined_call_operand.vmem [shape: bf16[128,128], index: 2, kind: input, shape index: {}]
  %s3 = inlined_call_operand.vmem [shape: f32[1,128], index: 3, kind: input, shape index: {}]
  %s4 = inlined_call_operand.hbm [shape: f32[8,128], index: 4, kind: output, shape index: {}]
  %s5 = sld [smem:[#allocation0]]
  $region34: #{graph_convolution.3} parent=0
    _
  %s7 = ssub.s32 1, %s5
  %s8 = scalar_select 0, %s7, %s5
  %9 = sst [smem:[#allocation4]] %s0
  $region1: #{graph_convolution.3} parent=0
    #allocation5 [shape = 'u8[4096]{0}', space=vmem, size = 0x1000, scoped, tag = 'output window, operand 0, single buffered']
    #allocation6 [shape = 's32[1]{0}', space=sflag, size = 0x4, scoped, tag = 'scoped memory for graph_convolution.3']
    %10 = vsyncpa [#allocation6], 0
    // Predicated region
    $region2: #{graph_convolution.3} parent=1 // pred_check
      _
    $region3: #{graph_convolution.3} parent=1 // pred_check_branch
      %12 = sbr.rel (0) target = $region5
    $region4: #{graph_convolution.3} parent=1 // pred_region
      _
    $region5: #{graph_convolution.3} parent=1 // pred_fallthru
      _
    // Predicated region
    $region6: #{graph_convolution.3} parent=1 // pred_check
      _
    $region7: #{graph_convolution.3} parent=1 // pred_check_branch
      %14 = sbr.rel (0) target = $region9
    $region8: #{graph_convolution.3} parent=1 // pred_region
      _
    $region9: #{graph_convolution.3} parent=1 // pred_fallthru
      _
    // Predicated region
    $region10: #{graph_convolution.3} parent=1 // pred_check
      _
    $region11: #{graph_convolution.3} parent=1 // pred_check_branch
      %16 = sbr.rel (0) target = $region13
    $region12: #{graph_convolution.3} parent=1 // pred_region
      _
    $region13: #{graph_convolution.3} parent=1 // pred_fallthru
      _
    %p18 = scmp.eq.s32.totalorder 0, 0
    // Predicated region
    $region14: #{graph_convolution.3} parent=1 // pred_check
      %p19 = pneg %p18
    $region15: #{graph_convolution.3} parent=1 // pred_check_branch
      %21 = sbr.rel (%p19) target = $region17
    $region16: #{graph_convolution.3} parent=1 // pred_region
      %22 = vst [vmem:[#allocation2] sm:$0xff] 0.0
    $region17: #{graph_convolution.3} parent=1 // pred_fallthru
      _
    %s23 = sadd.s32 0, 0
    %s24 = sld [smem:[#allocation4 + %s23]]
    %p25 = scmp.ne.s32.totalorder %s24, 0
    // Predicated region
    $region18: #{graph_convolution.3} parent=1 // pred_check
      %p26 = pneg %p25
    $region19: #{graph_convolution.3} parent=1 // pred_check_branch
      %28 = sbr.rel (%p26) target = $region21
    $region20: #{graph_convolution.3} parent=1 // pred_region
      %v29 = vld [vmem:[#allocation2] sm:$0xff]
      %v30 = vld [vmem:[%s1] sm:$0xf]
      %v31 = vld [vmem:[%s2] sm:$0xf]
      %v32 = vld [vmem:[%s2 + $0x4] sm:$0xf]
      %v33 = vld [vmem:[%s2 + $0x8] sm:$0xf]
      %v34 = vld [vmem:[%s2 + $0xc] sm:$0xf]
      %v35 = vld [vmem:[%s2 + $0x10] sm:$0xf]
      %v36 = vld [vmem:[%s2 + $0x14] sm:$0xf]
      %v37 = vld [vmem:[%s2 + $0x18] sm:$0xf]
      %v38 = vld [vmem:[%s2 + $0x1c] sm:$0xf]
      %v39 = vld [vmem:[%s2 + $0x20] sm:$0xf]
      %v40 = vld [vmem:[%s2 + $0x24] sm:$0xf]
      %v41 = vld [vmem:[%s2 + $0x28] sm:$0xf]
      %v42 = vld [vmem:[%s2 + $0x2c] sm:$0xf]
      %v43 = vld [vmem:[%s2 + $0x30] sm:$0xf]
      %v44 = vld [vmem:[%s2 + $0x34] sm:$0xf]
      %v45 = vld [vmem:[%s2 + $0x38] sm:$0xf]
      %v46 = vld [vmem:[%s2 + $0x3c] sm:$0xf]
      %v63 = vunpack.c.l.b16 %v31
      %v64 = vunpack.c.l.b16 %v32
      %v65 = vunpack.c.l.b16 %v33
      %v66 = vunpack.c.l.b16 %v34
      %v67 = vunpack.c.l.b16 %v35
      %v68 = vunpack.c.l.b16 %v36
      %v69 = vunpack.c.l.b16 %v37
      %v70 = vunpack.c.l.b16 %v38
      %v71 = vunpack.c.l.b16 %v39
      %v72 = vunpack.c.l.b16 %v40
      %v73 = vunpack.c.l.b16 %v41
      %v74 = vunpack.c.l.b16 %v42
      %v75 = vunpack.c.l.b16 %v43
      %v76 = vunpack.c.l.b16 %v44
      %v77 = vunpack.c.l.b16 %v45
      %v78 = vunpack.c.l.b16 %v46
      %v79 = vpack.c.b16 %v64, %v63
      %v80 = vpack.c.b16 %v66, %v65
      %v81 = vpack.c.b16 %v68, %v67
      %v82 = vpack.c.b16 %v70, %v69
      %v83 = vpack.c.b16 %v72, %v71
      %v84 = vpack.c.b16 %v74, %v73
      %v85 = vpack.c.b16 %v76, %v75
      %v86 = vpack.c.b16 %v78, %v77
      %95 = vmatprep.subr.bf16.mxu0 0
      %96 = vmatpush1.bf16.msra.mxu0 %v79
      %97 = vmatprep.subr.bf16.mxu0 0
      %98 = vmatpush1.bf16.msra.mxu0 %v80
      %99 = vmatprep.subr.bf16.mxu0 0
      %100 = vmatpush1.bf16.msra.mxu0 %v81
      %101 = vmatprep.subr.bf16.mxu0 0
      %102 = vmatpush1.bf16.msra.mxu0 %v82
      %103 = vmatprep.subr.bf16.mxu0 0
      %104 = vmatpush1.bf16.msra.mxu0 %v83
      %105 = vmatprep.subr.bf16.mxu0 0
      %106 = vmatpush1.bf16.msra.mxu0 %v84
      %107 = vmatprep.subr.bf16.mxu0 0
      %108 = vmatpush1.bf16.msra.mxu0 %v85
      %109 = vmatprep.subr.bf16.mxu0 0
      %110 = vmatpush1.bf16.msra.mxu0 %v86
      %111 = vmatprep.subr.bf16.mxu0 0
      %112 = vmatpush1.bf16.msra.mxu0 0
      %113 = vmatprep.subr.bf16.mxu0 0
      %114 = vmatpush1.bf16.msra.mxu0 0
      %115 = vmatprep.subr.bf16.mxu0 0
      %116 = vmatpush1.bf16.msra.mxu0 0
      %117 = vmatprep.subr.bf16.mxu0 0
      %118 = vmatpush1.bf16.msra.mxu0 0
      %119 = vmatprep.subr.bf16.mxu0 0
      %120 = vmatpush1.bf16.msra.mxu0 0
      %121 = vmatprep.subr.bf16.mxu0 0
      %122 = vmatpush1.bf16.msra.mxu0 0
      %123 = vmatprep.subr.bf16.mxu0 0
      %124 = vmatpush1.bf16.msra.mxu0 0
      %125 = vmatprep.subr.bf16.mxu0 0
      %126 = vmatpush1.bf16.msra.mxu0 0
      %127 = vmatprep.mubr.bf16.mxu0 0
      %128 = vmatmul.mubr.bf16.gmra.mrb[0].mxu0 %v30
      %v129 = vpop.f32.mrb[0].mxu0
      %v130 = vadd.f32 0.0, %v129
      %v131 = vpop.f32.mrb[0].mxu0
      %v132 = vpop.f32.mrb[0].mxu0
      %v133 = vpop.f32.mrb[0].mxu0
      %134 = vdwg.mxu0
      %v135 = vadd.f32 %v29, %v130
      %136 = vst [vmem:[#allocation2] sm:$0xff] %v135
    $region21: #{graph_convolution.3} parent=1 // pred_fallthru
      _
    // Predicated region
    $region22: #{graph_convolution.3} parent=1 // pred_check
      %p137 = pneg %p18
    $region23: #{graph_convolution.3} parent=1 // pred_check_branch
      %139 = sbr.rel (%p137) target = $region25
    $region24: #{graph_convolution.3} parent=1 // pred_region
      %v140 = vld [vmem:[#allocation2] sm:$0xff]
      %v141 = vld [vmem:[%s3] sm:$0x1]
      %v143 = vlaneseq
      %v144 = vshrl.u32 %v143, 7
      %v145 = vsub.s32 0, %v144
      %v146 = vrot.slane %v141, %v145
      %v148 = vadd.f32 %v140, %v146
      %149 = vst [vmem:[#allocation5] sm:$0xff] %v148
    $region25: #{graph_convolution.3} parent=1 // pred_fallthru
      _
    // Predicated region
    $region26: #{graph_convolution.3} parent=1 // pred_check
      _
    $region27: #{graph_convolution.3} parent=1 // pred_check_branch
      %151 = sbr.rel (0) target = $region29
    $region28: #{graph_convolution.3} parent=1 // pred_region
      %s153 = ssub.s32 128, 128
      %154 = vsyncadd [#allocation6], %s153
      %s156 = sshll.u32 [#allocation5], 4
      %s157 = int_to_ptr.vmem [resolvable:$true] %s156
      %159 = dma.vmem_to_hbm [thread:$0]  %s157, 128, %s4, [#allocation6]
    $region29: #{graph_convolution.3} parent=1 // pred_fallthru
      _
    // Predicated region
    $region30: #{graph_convolution.3} parent=1 // pred_check
      _
    $region31: #{graph_convolution.3} parent=1 // pred_check_branch
      %161 = sbr.rel (0) target = $region33
    $region32: #{graph_convolution.3} parent=1 // pred_region
      %162 = dma.done [#allocation6], 128
    $region33: #{graph_convolution.3} parent=1 // pred_fallthru
      _
    %163 = vsyncpa [#allocation6], 1

// kernel: graph_convolution.2
$region0: #{graph_convolution.2}
  #allocation0 [shape = 'u32[]', space=smem, size = 0x4, offset = 0x4, fixed_abs, tag = 'smem constant byte address 0x4 - core index']
  #allocation1 [shape = 'u32[144,128]{1,0:T(1,128)}', space=vmem, size = 0x12000, scoped, tag = 'internal scratch']
  %s0 = inlined_call_operand.vmem [shape: bf16[128,128], index: 0, kind: input, shape index: {}]
  %s1 = inlined_call_operand.vmem [shape: bf16[128,128], index: 1, kind: input, shape index: {}]
  %s2 = inlined_call_operand.vmem [shape: bf16[128,128], index: 2, kind: output, shape index: {}]
  %s3 = sld [smem:[#allocation0]]
  $region18: #{graph_convolution.2} parent=0
    _
  %s5 = ssub.s32 1, %s3
  %s6 = scalar_select 0, %s5, %s3
  // Predicated region
  $region2: #{graph_convolution.2} parent=0 // pred_check
    _
  $region3: #{graph_convolution.2} parent=0 // pred_check_branch
    %8 = sbr.rel (0) target = $region5
  $region4: #{graph_convolution.2} parent=0 // pred_region
    _
  $region5: #{graph_convolution.2} parent=0 // pred_fallthru
    _
  // Predicated region
  $region6: #{graph_convolution.2} parent=0 // pred_check
    _
  $region7: #{graph_convolution.2} parent=0 // pred_check_branch
    %10 = sbr.rel (0) target = $region9
  $region8: #{graph_convolution.2} parent=0 // pred_region
    _
  $region9: #{graph_convolution.2} parent=0 // pred_fallthru
    _
  %v12 = vld [vmem:[%s0] sm:$0xf]
  %v13 = vld [vmem:[%s0 + $0x4] sm:$0xf]
  %v14 = vld [vmem:[%s0 + $0x8] sm:$0xf]
  %v15 = vld [vmem:[%s0 + $0xc] sm:$0xf]
  %v16 = vld [vmem:[%s0 + $0x10] sm:$0xf]
  %v17 = vld [vmem:[%s0 + $0x14] sm:$0xf]
  %v18 = vld [vmem:[%s0 + $0x18] sm:$0xf]
  %v19 = vld [vmem:[%s0 + $0x1c] sm:$0xf]
  %v20 = vld [vmem:[%s0 + $0x20] sm:$0xf]
  %v21 = vld [vmem:[%s0 + $0x24] sm:$0xf]
  %v22 = vld [vmem:[%s0 + $0x28] sm:$0xf]
  %v23 = vld [vmem:[%s0 + $0x2c] sm:$0xf]
  %v24 = vld [vmem:[%s0 + $0x30] sm:$0xf]
  %v25 = vld [vmem:[%s0 + $0x34] sm:$0xf]
  %v26 = vld [vmem:[%s0 + $0x38] sm:$0xf]
  %v27 = vld [vmem:[%s0 + $0x3c] sm:$0xf]
  %v28 = vld [vmem:[%s1] sm:$0xf]
  %v29 = vld [vmem:[%s1 + $0x4] sm:$0xf]
  %v30 = vld [vmem:[%s1 + $0x8] sm:$0xf]
  %v31 = vld [vmem:[%s1 + $0xc] sm:$0xf]
  %v32 = vld [vmem:[%s1 + $0x10] sm:$0xf]
  %v33 = vld [vmem:[%s1 + $0x14] sm:$0xf]
  %v34 = vld [vmem:[%s1 + $0x18] sm:$0xf]
  %v35 = vld [vmem:[%s1 + $0x1c] sm:$0xf]
  %v36 = vld [vmem:[%s1 + $0x20] sm:$0xf]
  %v37 = vld [vmem:[%s1 + $0x24] sm:$0xf]
  %v38 = vld [vmem:[%s1 + $0x28] sm:$0xf]
  %v39 = vld [vmem:[%s1 + $0x2c] sm:$0xf]
  %v40 = vld [vmem:[%s1 + $0x30] sm:$0xf]
  %v41 = vld [vmem:[%s1 + $0x34] sm:$0xf]
  %v42 = vld [vmem:[%s1 + $0x38] sm:$0xf]
  %v43 = vld [vmem:[%s1 + $0x3c] sm:$0xf]
  %v60 = vunpack.c.l.b16 %v12
  %v61 = vunpack.c.l.b16 %v13
  %v62 = vunpack.c.l.b16 %v14
  %v63 = vunpack.c.l.b16 %v15
  %v64 = vunpack.c.l.b16 %v16
  %v65 = vunpack.c.l.b16 %v17
  %v66 = vunpack.c.l.b16 %v18
  %v67 = vunpack.c.l.b16 %v19
  %v68 = vunpack.c.l.b16 %v20
  %v69 = vunpack.c.l.b16 %v21
  %v70 = vunpack.c.l.b16 %v22
  %v71 = vunpack.c.l.b16 %v23
  %v72 = vunpack.c.l.b16 %v24
  %v73 = vunpack.c.l.b16 %v25
  %v74 = vunpack.c.l.b16 %v26
  %v75 = vunpack.c.l.b16 %v27
  %v76 = vpack.c.b16 %v61, %v60
  %v77 = vpack.c.b16 %v63, %v62
  %v78 = vpack.c.b16 %v65, %v64
  %v79 = vpack.c.b16 %v67, %v66
  %v80 = vpack.c.b16 %v69, %v68
  %v81 = vpack.c.b16 %v71, %v70
  %v82 = vpack.c.b16 %v73, %v72
  %v83 = vpack.c.b16 %v75, %v74
  %v108 = vunpack.c.l.b16 %v28
  %v109 = vunpack.c.l.b16 %v29
  %v110 = vunpack.c.l.b16 %v30
  %v111 = vunpack.c.l.b16 %v31
  %v112 = vunpack.c.l.b16 %v32
  %v113 = vunpack.c.l.b16 %v33
  %v114 = vunpack.c.l.b16 %v34
  %v115 = vunpack.c.l.b16 %v35
  %v116 = vunpack.c.l.b16 %v36
  %v117 = vunpack.c.l.b16 %v37
  %v118 = vunpack.c.l.b16 %v38
  %v119 = vunpack.c.l.b16 %v39
  %v120 = vunpack.c.l.b16 %v40
  %v121 = vunpack.c.l.b16 %v41
  %v122 = vunpack.c.l.b16 %v42
  %v123 = vunpack.c.l.b16 %v43
  %v124 = vpack.c.b16 %v109, %v108
  %v125 = vpack.c.b16 %v111, %v110
  %v126 = vpack.c.b16 %v113, %v112
  %v127 = vpack.c.b16 %v115, %v114
  %v128 = vpack.c.b16 %v117, %v116
  %v129 = vpack.c.b16 %v119, %v118
  %v130 = vpack.c.b16 %v121, %v120
  %v131 = vpack.c.b16 %v123, %v122
  %140 = vmatprep.subr.bf16.mxu0 0
  %141 = vmatpush1.bf16.msra.mxu0 %v124
  %142 = vmatprep.subr.bf16.mxu0 0
  %143 = vmatpush1.bf16.msra.mxu0 %v125
  %144 = vmatprep.subr.bf16.mxu0 0
  %145 = vmatpush1.bf16.msra.mxu0 %v126
  %146 = vmatprep.subr.bf16.mxu0 0
  %147 = vmatpush1.bf16.msra.mxu0 %v127
  %148 = vmatprep.subr.bf16.mxu0 0
  %149 = vmatpush1.bf16.msra.mxu0 %v128
  %150 = vmatprep.subr.bf16.mxu0 0
  %151 = vmatpush1.bf16.msra.mxu0 %v129
  %152 = vmatprep.subr.bf16.mxu0 0
  %153 = vmatpush1.bf16.msra.mxu0 %v130
  %154 = vmatprep.subr.bf16.mxu0 0
  %155 = vmatpush1.bf16.msra.mxu0 %v131
  %156 = vmatprep.subr.bf16.mxu0 0
  %157 = vmatpush1.bf16.msra.mxu0 0
  %158 = vmatprep.subr.bf16.mxu0 0
  %159 = vmatpush1.bf16.msra.mxu0 0
  %160 = vmatprep.subr.bf16.mxu0 0
  %161 = vmatpush1.bf16.msra.mxu0 0
  %162 = vmatprep.subr.bf16.mxu0 0
  %163 = vmatpush1.bf16.msra.mxu0 0
  %164 = vmatprep.subr.bf16.mxu0 0
  %165 = vmatpush1.bf16.msra.mxu0 0
  %166 = vmatprep.subr.bf16.mxu0 0
  %167 = vmatpush1.bf16.msra.mxu0 0
  %168 = vmatprep.subr.bf16.mxu0 0
  %169 = vmatpush1.bf16.msra.mxu0 0
  %170 = vmatprep.subr.bf16.mxu0 0
  %171 = vmatpush1.bf16.msra.mxu0 0
  %172 = vmatprep.mubr.bf16.mxu0 0
  %173 = vmatmul.mubr.bf16.gmra.mrb[0].mxu0 %v76
  %v174 = vpop.f32.mrb[0].mxu0
  %v175 = vadd.f32 0.0, %v174
  %v176 = vpop.f32.mrb[0].mxu0
  %v177 = vpop.f32.mrb[0].mxu0
  %v178 = vadd.f32 0.0, %v177
  %v179 = vpop.f32.mrb[0].mxu0
  %180 = vmatprep.mubr.bf16.mxu0 0
  %181 = vmatmul.mubr.bf16.gmra.mrb[0].mxu0 %v77
  %v182 = vpop.f32.mrb[0].mxu0
  %v183 = vadd.f32 0.0, %v182
  %v184 = vpop.f32.mrb[0].mxu0
  %v185 = vpop.f32.mrb[0].mxu0
  %v186 = vadd.f32 0.0, %v185
  %v187 = vpop.f32.mrb[0].mxu0
  %188 = vmatprep.mubr.bf16.mxu0 0
  %189 = vmatmul.mubr.bf16.gmra.mrb[0].mxu0 %v78
  %v190 = vpop.f32.mrb[0].mxu0
  %v191 = vadd.f32 0.0, %v190
  %v192 = vpop.f32.mrb[0].mxu0
  %v193 = vpop.f32.mrb[0].mxu0
  %v194 = vadd.f32 0.0, %v193
  %v195 = vpop.f32.mrb[0].mxu0
  %196 = vmatprep.mubr.bf16.mxu0 0
  %197 = vmatmul.mubr.bf16.gmra.mrb[0].mxu0 %v79
  %v198 = vpop.f32.mrb[0].mxu0
  %v199 = vadd.f32 0.0, %v198
  %v200 = vpop.f32.mrb[0].mxu0
  %v201 = vpop.f32.mrb[0].mxu0
  %v202 = vadd.f32 0.0, %v201
  %v203 = vpop.f32.mrb[0].mxu0
  %204 = vmatprep.mubr.bf16.mxu0 0
  %205 = vmatmul.mubr.bf16.gmra.mrb[0].mxu0 %v80
  %v206 = vpop.f32.mrb[0].mxu0
  %v207 = vadd.f32 0.0, %v206
  %v208 = vpop.f32.mrb[0].mxu0
  %v209 = vpop.f32.mrb[0].mxu0
  %v210 = vadd.f32 0.0, %v209
  %v211 = vpop.f32.mrb[0].mxu0
  %212 = vmatprep.mubr.bf16.mxu0 0
  %213 = vmatmul.mubr.bf16.gmra.mrb[0].mxu0 %v81
  %v214 = vpop.f32.mrb[0].mxu0
  %v215 = vadd.f32 0.0, %v214
  %v216 = vpop.f32.mrb[0].mxu0
  %v217 = vpop.f32.mrb[0].mxu0
  %v218 = vadd.f32 0.0, %v217
  %v219 = vpop.f32.mrb[0].mxu0
  %220 = vmatprep.mubr.bf16.mxu0 0
  %221 = vmatmul.mubr.bf16.gmra.mrb[0].mxu0 %v82
  %v222 = vpop.f32.mrb[0].mxu0
  %v223 = vadd.f32 0.0, %v222
  %v224 = vpop.f32.mrb[0].mxu0
  %v225 = vpop.f32.mrb[0].mxu0
  %v226 = vadd.f32 0.0, %v225
  %v227 = vpop.f32.mrb[0].mxu0
  %228 = vmatprep.mubr.bf16.mxu0 0
  %229 = vmatmul.mubr.bf16.gmra.mrb[0].mxu0 %v83
  %v230 = vpop.f32.mrb[0].mxu0
  %v231 = vadd.f32 0.0, %v230
  %v232 = vpop.f32.mrb[0].mxu0
  %v233 = vpop.f32.mrb[0].mxu0
  %v234 = vadd.f32 0.0, %v233
  %v235 = vpop.f32.mrb[0].mxu0
  %236 = vdwg.mxu0
  %v237 = vpack.c.bf16 %v178, %v175
  %v238 = vpack.c.bf16 %v186, %v183
  %v239 = vpack.c.bf16 %v194, %v191
  %v240 = vpack.c.bf16 %v202, %v199
  %v241 = vpack.c.bf16 %v210, %v207
  %v242 = vpack.c.bf16 %v218, %v215
  %v243 = vpack.c.bf16 %v226, %v223
  %v244 = vpack.c.bf16 %v234, %v231
  %v253 = vunpack.c.l.b16 %v237
  %v254 = vunpack.c.h.b16 %v237
  %v255 = vunpack.c.l.b16 %v238
  %v256 = vunpack.c.h.b16 %v238
  %v257 = vunpack.c.l.b16 %v239
  %v258 = vunpack.c.h.b16 %v239
  %v259 = vunpack.c.l.b16 %v240
  %v260 = vunpack.c.h.b16 %v240
  %v261 = vunpack.c.l.b16 %v241
  %v262 = vunpack.c.h.b16 %v241
  %v263 = vunpack.c.l.b16 %v242
  %v264 = vunpack.c.h.b16 %v242
  %v265 = vunpack.c.l.b16 %v243
  %v266 = vunpack.c.h.b16 %v243
  %v267 = vunpack.c.l.b16 %v244
  %v268 = vunpack.c.h.b16 %v244
  %v269 = vpack.c.b16 %v253, %v253
  %v270 = vpack.c.b16 %v254, %v254
  %v271 = vpack.c.b16 %v255, %v255
  %v272 = vpack.c.b16 %v256, %v256
  %v273 = vpack.c.b16 %v257, %v257
  %v274 = vpack.c.b16 %v258, %v258
  %v275 = vpack.c.b16 %v259, %v259
  %v276 = vpack.c.b16 %v260, %v260
  %v277 = vpack.c.b16 %v261, %v261
  %v278 = vpack.c.b16 %v262, %v262
  %v279 = vpack.c.b16 %v263, %v263
  %v280 = vpack.c.b16 %v264, %v264
  %v281 = vpack.c.b16 %v265, %v265
  %v282 = vpack.c.b16 %v266, %v266
  %v283 = vpack.c.b16 %v267, %v267
  %v284 = vpack.c.b16 %v268, %v268
  %301 = vst [vmem:[%s2] sm:$0xf] %v269
  %302 = vst [vmem:[%s2 + $0x4] sm:$0xf] %v270
  %303 = vst [vmem:[%s2 + $0x8] sm:$0xf] %v271
  %304 = vst [vmem:[%s2 + $0xc] sm:$0xf] %v272
  %305 = vst [vmem:[%s2 + $0x10] sm:$0xf] %v273
  %306 = vst [vmem:[%s2 + $0x14] sm:$0xf] %v274
  %307 = vst [vmem:[%s2 + $0x18] sm:$0xf] %v275
  %308 = vst [vmem:[%s2 + $0x1c] sm:$0xf] %v276
  %309 = vst [vmem:[%s2 + $0x20] sm:$0xf] %v277
  %310 = vst [vmem:[%s2 + $0x24] sm:$0xf] %v278
  %311 = vst [vmem:[%s2 + $0x28] sm:$0xf] %v279
  %312 = vst [vmem:[%s2 + $0x2c] sm:$0xf] %v280
  %313 = vst [vmem:[%s2 + $0x30] sm:$0xf] %v281
  %314 = vst [vmem:[%s2 + $0x34] sm:$0xf] %v282
  %315 = vst [vmem:[%s2 + $0x38] sm:$0xf] %v283
  %316 = vst [vmem:[%s2 + $0x3c] sm:$0xf] %v284
  // Predicated region
  $region10: #{graph_convolution.2} parent=0 // pred_check
    _
  $region11: #{graph_convolution.2} parent=0 // pred_check_branch
    %318 = sbr.rel (0) target = $region13
  $region12: #{graph_convolution.2} parent=0 // pred_region
    _
  $region13: #{graph_convolution.2} parent=0 // pred_fallthru
    _
  // Predicated region
  $region14: #{graph_convolution.2} parent=0 // pred_check
    _
  $region15: #{graph_convolution.2} parent=0 // pred_check_branch
    %320 = sbr.rel (0) target = $region17
  $region16: #{graph_convolution.2} parent=0 // pred_region
    _
  $region17: #{graph_convolution.2} parent=0 // pred_fallthru
    _

</llo_original>
